<compile_context>
chip_gen: v6e
topology: v6e:2x2x1
jax: 0.10.0
libtpu: 0.0.40
codegen_flags: <defaults>
</compile_context>

<pallas_src>
import functools

import jax
import jax.numpy as jnp
from jax.experimental import pallas as pl
from jax.experimental.pallas import tpu as pltpu


def _normalize_kernel(x_ref, o_ref, *, power):
    # (tb, D_pad) tile; reduce along the lane (feature) axis.
    x = x_ref[...].astype(jnp.float32)
    if power == 2:
        # Fast path: rsqrt avoids the exp/log float-pow chain + extra divide.
        sumsq = jnp.sum(x * x, axis=1, keepdims=True)
        o_ref[...] = (x * jax.lax.rsqrt(sumsq)).astype(o_ref.dtype)
    else:
        # Generic p (matches torch .pow semantics, incl. NaN for odd p with
        # negative sums — same as the reference module).
        norm = jnp.sum(x ** power, axis=1, keepdims=True) ** (1.0 / power)
        o_ref[...] = (x * pl.reciprocal(norm, approx=False)).astype(o_ref.dtype)


def _choose_block_rows(batch, d_pad, itemsize, sublane):
    """Largest sublane-aligned row tile whose 2x-in + 2x-out pipeline buffers
    stay comfortably under the 32 MiB scoped-VMEM default on every gen."""
    max_block_bytes = 6 * 1024 * 1024          # 4 buffers * 6 MiB ~= 24 MiB
    row_bytes = d_pad * itemsize
    tb = max(sublane, (max_block_bytes // row_bytes) // sublane * sublane)
    b_ceil = pl.cdiv(batch, sublane) * sublane
    # Keep at least 2 grid steps when the batch allows it (v7x: 2 TCs).
    if b_ceil >= 2 * sublane:
        tb = min(tb, max(sublane, (b_ceil // 2) // sublane * sublane))
    return min(tb, b_ceil)


def normalize(x, power=2):
    """Lp-normalize rows of a 2-D array (B, D) along axis=1."""
    B, D = x.shape
    itemsize = jnp.dtype(x.dtype).itemsize
    sublane = max(8, 32 // itemsize)           # f32 -> 8, bf16 -> 16, int8 -> 32

    d_pad = pl.cdiv(D, 128) * 128              # lane-dense output stores
    tb = _choose_block_rows(B, d_pad, itemsize, sublane)
    b_pad = pl.cdiv(B, tb) * tb

    xp = x
    if (b_pad != B) or (d_pad != D):
        # Zero-pad: extra feature columns contribute 0 to the Lp sum; extra
        # batch rows are sliced away below (their values are irrelevant).
        xp = jnp.pad(x, ((0, b_pad - B), (0, d_pad - D)))

    kernel = functools.partial(_normalize_kernel, power=power)
    out = pl.pallas_call(
        kernel,
        out_shape=jax.ShapeDtypeStruct((b_pad, d_pad), x.dtype),
        grid_spec=pltpu.PrefetchScalarGridSpec(
            num_scalar_prefetch=0,
            grid=(b_pad // tb,),
            in_specs=[pl.BlockSpec((tb, d_pad), lambda i: (i, 0))],
            out_specs=pl.BlockSpec((tb, d_pad), lambda i: (i, 0)),
        ),
        compiler_params=pltpu.CompilerParams(
            dimension_semantics=("parallel",),
        ),
    )(xp)

    if (b_pad != B) or (d_pad != D):
        out = out[:B, :D]
    return out


def normalize_ref(x, power=2):
    # Pure-JAX reference mirroring the PyTorch module.
    norm = jnp.sum(x ** power, axis=1, keepdims=True) ** (1.0 / power)
    return x / norm


if __name__ == "__main__":
    key = jax.random.PRNGKey(0)
    k1, k2 = jax.random.split(key)

    # Lane-dense small shape (no padding path), module default p=2.
    x1 = jax.random.normal(k1, (8, 128), dtype=jnp.float32)
    out1 = jax.block_until_ready(normalize(x1, power=2))
    ref1 = normalize_ref(x1, power=2)
    assert out1.shape == x1.shape
    assert jnp.allclose(out1, ref1, atol=1e-5, rtol=1e-5), "p=2 aligned mismatch"

    # Unaligned shape exercising the pad/slice tail path.
    x2 = jax.random.normal(k2, (6, 40), dtype=jnp.float32)
    out2 = jax.block_until_ready(normalize(x2, power=2))
    ref2 = normalize_ref(x2, power=2)
    assert out2.shape == x2.shape
    assert jnp.allclose(out2, ref2, atol=1e-5, rtol=1e-5), "p=2 unaligned mismatch"

    # Generic-p path (p=4, positive input keeps fractional pow well-defined).
    x3 = jnp.abs(jax.random.normal(k1, (8, 128), dtype=jnp.float32)) + 0.1
    out3 = jax.block_until_ready(normalize(x3, power=4))
    ref3 = normalize_ref(x3, power=4)
    assert jnp.allclose(out3, ref3, atol=1e-5, rtol=1e-5), "p=4 mismatch"

    print("KERNEL_OK")
</pallas_src>

<mosaic_0001>
module attributes {stable_mosaic.version = 11 : i64} {
  func.func @_normalize_kernel(%arg0: i32, %arg1: memref<8x128xf32, #tpu.memory_space<vmem>>, %arg2: memref<8x128xf32, #tpu.memory_space<vmem>>) attributes {dimension_semantics = [#tpu.dimension_semantics<parallel>], iteration_bounds = array<i64: 1>, scalar_prefetch = 0 : i64, scratch_operands = 0 : i64, tpu.core_type = #tpu.core_type<tc>, window_params = [{transform_indices = @transform_0, window_bounds = array<i64: 8, 128>}, {transform_indices = @transform_1, window_bounds = array<i64: 8, 128>}]} {
    %c0 = arith.constant 0 : index
    %c0_0 = arith.constant 0 : index
    %0 = vector.load %arg1[%c0, %c0_0] : memref<8x128xf32, #tpu.memory_space<vmem>>, vector<8x128xf32>
    %1 = arith.mulf %0, %0 : vector<8x128xf32>
    %cst = arith.constant dense<0.000000e+00> : vector<8xf32>
    %2 = vector.multi_reduction <add>, %1, %cst [1] : vector<8x128xf32> to vector<8xf32>
    %3 = vector.shape_cast %2 : vector<8xf32> to vector<8x1xf32>
    %4 = math.rsqrt %3 : vector<8x1xf32>
    %5 = vector.broadcast %4 : vector<8x1xf32> to vector<8x128xf32>
    %6 = arith.mulf %0, %5 : vector<8x128xf32>
    %c0_1 = arith.constant 0 : index
    %c0_2 = arith.constant 0 : index
    %7 = vector.load %arg2[%c0_1, %c0_2] : memref<8x128xf32, #tpu.memory_space<vmem>>, vector<8x128xf32>
    tpu.vector_store %arg2[%c0_1, %c0_2], %6 {strides = array<i32>} : memref<8x128xf32, #tpu.memory_space<vmem>>, vector<8x128xf32>,
    return
  }
  func.func @transform_0(%arg0: i32) -> (i32, i32) {
    %c0_i32 = arith.constant 0 : i32
    %c0_i32_0 = arith.constant 0 : i32
    return %arg0, %c0_i32 : i32, i32
  }
  func.func @transform_1(%arg0: i32) -> (i32, i32) {
    %c0_i32 = arith.constant 0 : i32
    %c0_i32_0 = arith.constant 0 : i32
    return %arg0, %c0_i32 : i32, i32
  }
}

</mosaic_0001>

<llo_original>
// kernel: tpu_custom_call.1
$region0: #{tpu_custom_call.1}
  #allocation0 [shape = 'u32[]', space=smem, size = 0x4, offset = 0x4, fixed_abs, tag = 'smem constant byte address 0x4 - core index']
  #allocation1 [shape = 'u32[144,128]{1,0:T(1,128)}', space=vmem, size = 0x12000, scoped, tag = 'internal scratch']
  %s0 = inlined_call_operand.hbm [shape: f32[8,128], index: 0, kind: input, shape index: {}]
  %s1 = inlined_call_operand.hbm [shape: f32[8,128], index: 1, kind: output, shape index: {}]
  %s2 = sld [smem:[#allocation0]]
  $region18: #{tpu_custom_call.1} parent=0
    _
  %s4 = ssub.s32 1, %s2
  %s5 = scalar_select 0, %s4, %s2
  $region1: #{tpu_custom_call.1} parent=0
    #allocation2 [shape = 'u8[4096]{0}', space=vmem, size = 0x1000, scoped, tag = 'input window, operand 0, single buffered']
    #allocation3 [shape = 's32[1]{0}', space=sflag, size = 0x4, scoped, tag = 'scoped memory for tpu_custom_call.1']
    #allocation4 [shape = 's32[1]{0}', space=sflag, size = 0x4, scoped, tag = 'scoped memory for tpu_custom_call.1']
    #allocation5 [shape = 'u8[4096]{0}', space=vmem, size = 0x1000, scoped, tag = 'output window, operand 0, single buffered']
    %6 = vsyncpa [#allocation3], 0
    %7 = vsyncpa [#allocation4], 0
    // Predicated region
    $region2: #{tpu_custom_call.1} parent=1 // pred_check
      _
    $region3: #{tpu_custom_call.1} parent=1 // pred_check_branch
      %9 = sbr.rel (0) target = $region5
    $region4: #{tpu_custom_call.1} parent=1 // pred_region
      %s11 = ssub.s32 128, 128
      %12 = vsyncadd [#allocation3], %s11
      %s14 = sshll.u32 [#allocation2], 4
      %s15 = int_to_ptr.vmem [resolvable:$true] %s14
      %17 = dma.hbm_to_vmem [thread:$0]  %s0, 128, %s15, [#allocation3]
    $region5: #{tpu_custom_call.1} parent=1 // pred_fallthru
      _
    // Predicated region
    $region6: #{tpu_custom_call.1} parent=1 // pred_check
      _
    $region7: #{tpu_custom_call.1} parent=1 // pred_check_branch
      %19 = sbr.rel (0) target = $region9
    $region8: #{tpu_custom_call.1} parent=1 // pred_region
      %20 = dma.done [#allocation3], 128
    $region9: #{tpu_custom_call.1} parent=1 // pred_fallthru
      _
    %v21 = vld [vmem:[#allocation2] sm:$0xff]
    %v22 = vmul.f32 %v21, %v21
    %23 = vadd.xlane.f32.xlu0 %v22
    %v24 = vpop.xlane.xlu0 %23
    %v25 = vrsqrt.pop %v24
    %v26 = vmul.f32 %v21, %v25
    %27 = vst [vmem:[#allocation5] sm:$0xff] %v26
    // Predicated region
    $region10: #{tpu_custom_call.1} parent=1 // pred_check
      _
    $region11: #{tpu_custom_call.1} parent=1 // pred_check_branch
      %29 = sbr.rel (0) target = $region13
    $region12: #{tpu_custom_call.1} parent=1 // pred_region
      %s31 = ssub.s32 128, 128
      %32 = vsyncadd [#allocation4], %s31
      %s34 = sshll.u32 [#allocation5], 4
      %s35 = int_to_ptr.vmem [resolvable:$true] %s34
      %37 = dma.vmem_to_hbm [thread:$0]  %s35, 128, %s1, [#allocation4]
    $region13: #{tpu_custom_call.1} parent=1 // pred_fallthru
      _
    // Predicated region
    $region14: #{tpu_custom_call.1} parent=1 // pred_check
      _
    $region15: #{tpu_custom_call.1} parent=1 // pred_check_branch
      %39 = sbr.rel (0) target = $region17
    $region16: #{tpu_custom_call.1} parent=1 // pred_region
      %40 = dma.done [#allocation4], 128
    $region17: #{tpu_custom_call.1} parent=1 // pred_fallthru
      _
    %41 = vsyncpa [#allocation3], 1
    %42 = vsyncpa [#allocation4], 1

</llo_original>
